<compile_context>
chip_gen: v7x
topology: tpu7x:2x2x1
jax: 0.10.0
libtpu: 0.0.40
codegen_flags: <defaults>
</compile_context>

<pallas_src>
import jax
import jax.numpy as jnp
from jax.experimental import pallas as pl
from jax.experimental.pallas import tpu as pltpu


_LANE = 128


def _round_up(x, m):
    return (x + m - 1) // m * m


# --------------------------------------------------------------------------- #
# Fused Pallas kernel: patches -> logits (at token resolution)
# --------------------------------------------------------------------------- #
def _fused_seg_kernel(patches_ref, w_patch_ref, b_patch_ref,
                      ln_g_ref, ln_b_ref,
                      w_mlp1_ref, b_mlp1_ref, w_mlp2_ref, b_mlp2_ref,
                      w_dec_ref, b_dec_ref, w_head_ref, b_head_ref,
                      o_ref):
    # rows = tokens (a tile of B*Hp*Wp), cols = channels (lane axis).
    f32 = jnp.float32

    # frozen dinov2-style patch embed (input normalization pre-folded into
    # w_patch / b_patch, so raw pixel patches come straight in).
    tok = jnp.dot(patches_ref[...], w_patch_ref[...], preferred_element_type=f32)
    tok = tok + b_patch_ref[...]

    # LayerNorm
    mu = jnp.mean(tok, axis=-1, keepdims=True)
    var = jnp.mean((tok - mu) ** 2, axis=-1, keepdims=True)
    tok = (tok - mu) * jax.lax.rsqrt(var + 1e-6)
    tok = tok * ln_g_ref[...] + ln_b_ref[...]

    # one MLP block with residual (stand-in for the frozen transformer blocks)
    # TODO(synk): PyTorch nn.GELU defaults to exact erf; tanh approximation used here.
    h = jnp.dot(tok, w_mlp1_ref[...], preferred_element_type=f32) + b_mlp1_ref[...]
    h = jax.nn.gelu(h)
    tok = tok + jnp.dot(h, w_mlp2_ref[...], preferred_element_type=f32) + b_mlp2_ref[...]

    # unet-style decoder 1x1 conv -> ReLU -> segmentation head (1x1 conv).
    # num_classes is zero-padded to a full 128-lane width for an unmasked store.
    d = jnp.dot(tok, w_dec_ref[...], preferred_element_type=f32) + b_dec_ref[...]
    d = jnp.maximum(d, 0.0)
    y = jnp.dot(d, w_head_ref[...], preferred_element_type=f32) + b_head_ref[...]
    o_ref[...] = y.astype(o_ref.dtype)


# --------------------------------------------------------------------------- #
# CustomSeg equivalent
# --------------------------------------------------------------------------- #
class CustomSegPallas:
    def __init__(self, num_classes, backbone_type="dinov2", segmodel_type="unet",
                 in_channels=4, target_size=(16, 16), hidden=32, patch=4):
        self.num_classes = num_classes
        self.backbone_type = backbone_type
        self.segmodel_type = segmodel_type
        self.in_channels = in_channels
        self.target_size = target_size
        self.hidden = hidden
        self.patch = patch

        key = jax.random.PRNGKey(42)
        ks = jax.random.split(key, 10)
        pdim = in_channels * patch * patch
        f32 = jnp.float32

        # prepare_image_for_backbone: per-channel normalization stats,
        # folded directly into the (frozen) patch-embed weights below.
        mean = jnp.linspace(0.4, 0.5, in_channels, dtype=f32)
        std = jnp.linspace(0.2, 0.3, in_channels, dtype=f32)
        inv_std = 1.0 / std
        # patch flattening order is (C, P, P) -> channel-major repeat
        mean_p = jnp.repeat(mean, patch * patch)        # (C*P*P,)
        inv_std_p = jnp.repeat(inv_std, patch * patch)  # (C*P*P,)

        w_patch_raw = jax.random.normal(ks[0], (pdim, hidden), f32) * (pdim ** -0.5)
        b_patch_raw = jnp.zeros((1, hidden), f32)
        # fold: ((x - mean) * inv_std) @ W + b == x @ (inv_std*W) + (b - (mean*inv_std) @ W)
        self.w_patch = w_patch_raw * inv_std_p[:, None]
        self.b_patch = b_patch_raw - (mean_p * inv_std_p)[None, :] @ w_patch_raw

        self.ln_g = jnp.ones((1, hidden), f32)
        self.ln_b = jnp.zeros((1, hidden), f32)
        self.w_mlp1 = jax.random.normal(ks[1], (hidden, 2 * hidden), f32) * (hidden ** -0.5)
        self.b_mlp1 = jnp.zeros((1, 2 * hidden), f32)
        self.w_mlp2 = jax.random.normal(ks[2], (2 * hidden, hidden), f32) * ((2 * hidden) ** -0.5)
        self.b_mlp2 = jnp.zeros((1, hidden), f32)

        # unet-style decoder head (1x1 conv -> ReLU -> 1x1 conv to num_classes),
        # with the class axis zero-padded to 128 lanes for a lane-dense store.
        self.w_dec = jax.random.normal(ks[3], (hidden, hidden), f32) * (hidden ** -0.5)
        self.b_dec = jnp.zeros((1, hidden), f32)
        nc_pad = _round_up(num_classes, _LANE)
        w_head_raw = jax.random.normal(ks[4], (hidden, num_classes), f32) * (hidden ** -0.5)
        self.w_head = jnp.zeros((hidden, nc_pad), f32).at[:, :num_classes].set(w_head_raw)
        self.b_head = jnp.zeros((1, nc_pad), f32)

    def __call__(self, images):  # NCHW -> N, num_classes, Ht, Wt
        B, C, H, W = images.shape
        P = self.patch
        Hp, Wp = H // P, W // P
        pdim = C * P * P

        # patchify glue: (B,C,H,W) -> (B*Hp*Wp, C*P*P)
        # TODO(synk): at realistic image sizes express this gather via the
        # kernel's BlockSpec/index_map (or manual DMA) instead of a
        # materialized XLA transpose.
        patches = images.reshape(B, C, Hp, P, Wp, P)
        patches = jnp.transpose(patches, (0, 2, 4, 1, 3, 5)).reshape(B * Hp * Wp, pdim)

        rows = B * Hp * Wp
        tile_rows = min(512, _round_up(rows, 8))
        rows_pad = _round_up(rows, tile_rows)
        if rows_pad != rows:
            patches = jnp.pad(patches, ((0, rows_pad - rows), (0, 0)))

        nc_pad = self.w_head.shape[1]
        grid = (rows_pad // tile_rows,)

        def row_spec(cols):
            return pl.BlockSpec((tile_rows, cols), lambda i: (i, 0))

        def w_spec(arr):
            return pl.BlockSpec(arr.shape, lambda i: (0, 0))

        logits_pad = pl.pallas_call(
            _fused_seg_kernel,
            out_shape=jax.ShapeDtypeStruct((rows_pad, nc_pad), images.dtype),
            grid=grid,
            in_specs=[
                row_spec(pdim),
                w_spec(self.w_patch), w_spec(self.b_patch),
                w_spec(self.ln_g), w_spec(self.ln_b),
                w_spec(self.w_mlp1), w_spec(self.b_mlp1),
                w_spec(self.w_mlp2), w_spec(self.b_mlp2),
                w_spec(self.w_dec), w_spec(self.b_dec),
                w_spec(self.w_head), w_spec(self.b_head),
            ],
            out_specs=row_spec(nc_pad),
            compiler_params=pltpu.CompilerParams(
                dimension_semantics=("parallel",)),
        )(patches, self.w_patch, self.b_patch, self.ln_g, self.ln_b,
          self.w_mlp1, self.b_mlp1, self.w_mlp2, self.b_mlp2,
          self.w_dec, self.b_dec, self.w_head, self.b_head)

        # the 1x1-conv head ran at token resolution; nearest-upsample the
        # (num_classes-channel) logits afterwards — identical result, far less data.
        # TODO(synk): smp.Unet uses multi-scale skips + bilinear upsampling;
        # single-level nearest-neighbor upsample of one feature level here.
        Ht, Wt = self.target_size
        fh, fw = Ht // Hp, Wt // Wp
        logits = logits_pad[:rows, :self.num_classes].reshape(B, Hp, Wp, self.num_classes)
        logits = jnp.repeat(jnp.repeat(logits, fh, axis=1), fw, axis=2)  # glue
        return jnp.transpose(logits, (0, 3, 1, 2))  # NCHW


if __name__ == "__main__":
    key = jax.random.PRNGKey(0)
    B, C, H, W = 2, 4, 16, 16
    x = jax.random.normal(key, (B, C, H, W), jnp.float32)

    model = CustomSegPallas(num_classes=3, backbone_type="dinov2",
                            segmodel_type="unet", in_channels=C,
                            target_size=(H, W), hidden=32, patch=4)

    logits = model(x)
    jax.block_until_ready(logits)
    assert logits.shape == (B, 3, H, W), logits.shape
    assert jnp.all(jnp.isfinite(logits))
    print("KERNEL_OK")
</pallas_src>

<mosaic_0001>
module attributes {stable_mosaic.version = 11 : i64} {
  func.func @_fused_seg_kernel(%arg0: i32, %arg1: memref<32x64xf32, #tpu.memory_space<vmem>>, %arg2: memref<64x32xf32, #tpu.memory_space<vmem>>, %arg3: memref<1x32xf32, #tpu.memory_space<vmem>>, %arg4: memref<1x32xf32, #tpu.memory_space<vmem>>, %arg5: memref<1x32xf32, #tpu.memory_space<vmem>>, %arg6: memref<32x64xf32, #tpu.memory_space<vmem>>, %arg7: memref<1x64xf32, #tpu.memory_space<vmem>>, %arg8: memref<64x32xf32, #tpu.memory_space<vmem>>, %arg9: memref<1x32xf32, #tpu.memory_space<vmem>>, %arg10: memref<32x32xf32, #tpu.memory_space<vmem>>, %arg11: memref<1x32xf32, #tpu.memory_space<vmem>>, %arg12: memref<32x128xf32, #tpu.memory_space<vmem>>, %arg13: memref<1x128xf32, #tpu.memory_space<vmem>>, %arg14: memref<32x128xf32, #tpu.memory_space<vmem>>) attributes {dimension_semantics = [#tpu.dimension_semantics<parallel>], iteration_bounds = array<i64: 1>, scalar_prefetch = 0 : i64, scratch_operands = 0 : i64, tpu.core_type = #tpu.core_type<tc>, window_params = [{transform_indices = @transform_0, window_bounds = array<i64: 32, 64>}, {pipeline_mode = #tpu.pipeline_mode<synchronous>, transform_indices = @transform_1, window_bounds = array<i64: 64, 32>}, {pipeline_mode = #tpu.pipeline_mode<synchronous>, transform_indices = @transform_2, window_bounds = array<i64: 1, 32>}, {pipeline_mode = #tpu.pipeline_mode<synchronous>, transform_indices = @transform_3, window_bounds = array<i64: 1, 32>}, {pipeline_mode = #tpu.pipeline_mode<synchronous>, transform_indices = @transform_4, window_bounds = array<i64: 1, 32>}, {pipeline_mode = #tpu.pipeline_mode<synchronous>, transform_indices = @transform_5, window_bounds = array<i64: 32, 64>}, {pipeline_mode = #tpu.pipeline_mode<synchronous>, transform_indices = @transform_6, window_bounds = array<i64: 1, 64>}, {pipeline_mode = #tpu.pipeline_mode<synchronous>, transform_indices = @transform_7, window_bounds = array<i64: 64, 32>}, {pipeline_mode = #tpu.pipeline_mode<synchronous>, transform_indices = @transform_8, window_bounds = array<i64: 1, 32>}, {pipeline_mode = #tpu.pipeline_mode<synchronous>, transform_indices = @transform_9, window_bounds = array<i64: 32, 32>}, {pipeline_mode = #tpu.pipeline_mode<synchronous>, transform_indices = @transform_10, window_bounds = array<i64: 1, 32>}, {pipeline_mode = #tpu.pipeline_mode<synchronous>, transform_indices = @transform_11, window_bounds = array<i64: 32, 128>}, {pipeline_mode = #tpu.pipeline_mode<synchronous>, transform_indices = @transform_12, window_bounds = array<i64: 1, 128>}, {transform_indices = @transform_13, window_bounds = array<i64: 32, 128>}]} {
    %c0 = arith.constant 0 : index
    %c0_0 = arith.constant 0 : index
    %0 = vector.load %arg1[%c0, %c0_0] : memref<32x64xf32, #tpu.memory_space<vmem>>, vector<32x64xf32>
    %c0_1 = arith.constant 0 : index
    %c0_2 = arith.constant 0 : index
    %1 = vector.load %arg2[%c0_1, %c0_2] : memref<64x32xf32, #tpu.memory_space<vmem>>, vector<64x32xf32>
    %cst = arith.constant dense<0.000000e+00> : vector<32x32xf32>
    %2 = tpu.matmul %0, %1, %cst {dimension_numbers = #tpu.dot_dimension_numbers<[1], [0], [0], [1], [0, 0, 1, 1], [], []>} : vector<32x64xf32>, vector<64x32xf32>, vector<32x32xf32> -> vector<32x32xf32>
    %c0_3 = arith.constant 0 : index
    %c0_4 = arith.constant 0 : index
    %3 = vector.load %arg3[%c0_3, %c0_4] : memref<1x32xf32, #tpu.memory_space<vmem>>, vector<1x32xf32>
    %4 = vector.broadcast %3 : vector<1x32xf32> to vector<32x32xf32>
    %5 = arith.addf %2, %4 : vector<32x32xf32>
    %cst_5 = arith.constant dense<0.000000e+00> : vector<32xf32>
    %6 = vector.multi_reduction <add>, %5, %cst_5 [1] : vector<32x32xf32> to vector<32xf32>
    %7 = vector.shape_cast %6 : vector<32xf32> to vector<32x1xf32>
    %cst_6 = arith.constant 3.200000e+01 : f32
    %8 = vector.broadcast %cst_6 : f32 to vector<32x1xf32>
    %9 = arith.divf %7, %8 : vector<32x1xf32>
    %10 = vector.broadcast %9 : vector<32x1xf32> to vector<32x32xf32>
    %11 = arith.subf %5, %10 : vector<32x32xf32>
    %12 = arith.mulf %11, %11 : vector<32x32xf32>
    %cst_7 = arith.constant dense<0.000000e+00> : vector<32xf32>
    %13 = vector.multi_reduction <add>, %12, %cst_7 [1] : vector<32x32xf32> to vector<32xf32>
    %14 = vector.shape_cast %13 : vector<32xf32> to vector<32x1xf32>
    %cst_8 = arith.constant 3.200000e+01 : f32
    %15 = vector.broadcast %cst_8 : f32 to vector<32x1xf32>
    %16 = arith.divf %14, %15 : vector<32x1xf32>
    %17 = vector.broadcast %9 : vector<32x1xf32> to vector<32x32xf32>
    %18 = arith.subf %5, %17 : vector<32x32xf32>
    %cst_9 = arith.constant 9.99999997E-7 : f32
    %19 = vector.broadcast %cst_9 : f32 to vector<32x1xf32>
    %20 = arith.addf %16, %19 : vector<32x1xf32>
    %21 = math.rsqrt %20 : vector<32x1xf32>
    %22 = vector.broadcast %21 : vector<32x1xf32> to vector<32x32xf32>
    %23 = arith.mulf %18, %22 : vector<32x32xf32>
    %c0_10 = arith.constant 0 : index
    %c0_11 = arith.constant 0 : index
    %24 = vector.load %arg4[%c0_10, %c0_11] : memref<1x32xf32, #tpu.memory_space<vmem>>, vector<1x32xf32>
    %25 = vector.broadcast %24 : vector<1x32xf32> to vector<32x32xf32>
    %26 = arith.mulf %23, %25 : vector<32x32xf32>
    %c0_12 = arith.constant 0 : index
    %c0_13 = arith.constant 0 : index
    %27 = vector.load %arg5[%c0_12, %c0_13] : memref<1x32xf32, #tpu.memory_space<vmem>>, vector<1x32xf32>
    %28 = vector.broadcast %27 : vector<1x32xf32> to vector<32x32xf32>
    %29 = arith.addf %26, %28 : vector<32x32xf32>
    %c0_14 = arith.constant 0 : index
    %c0_15 = arith.constant 0 : index
    %30 = vector.load %arg6[%c0_14, %c0_15] : memref<32x64xf32, #tpu.memory_space<vmem>>, vector<32x64xf32>
    %cst_16 = arith.constant dense<0.000000e+00> : vector<32x64xf32>
    %31 = tpu.matmul %29, %30, %cst_16 {dimension_numbers = #tpu.dot_dimension_numbers<[1], [0], [0], [1], [0, 0, 1, 1], [], []>} : vector<32x32xf32>, vector<32x64xf32>, vector<32x64xf32> -> vector<32x64xf32>
    %c0_17 = arith.constant 0 : index
    %c0_18 = arith.constant 0 : index
    %32 = vector.load %arg7[%c0_17, %c0_18] : memref<1x64xf32, #tpu.memory_space<vmem>>, vector<1x64xf32>
    %33 = vector.broadcast %32 : vector<1x64xf32> to vector<32x64xf32>
    %34 = arith.addf %31, %33 : vector<32x64xf32>
    %35 = arith.mulf %34, %34 : vector<32x64xf32>
    %36 = arith.mulf %34, %35 : vector<32x64xf32>
    %cst_19 = arith.constant 4.471500e-02 : f32
    %37 = vector.broadcast %cst_19 : f32 to vector<32x64xf32>
    %38 = arith.mulf %37, %36 : vector<32x64xf32>
    %39 = arith.addf %34, %38 : vector<32x64xf32>
    %cst_20 = arith.constant 0.797884583 : f32
    %40 = vector.broadcast %cst_20 : f32 to vector<32x64xf32>
    %41 = arith.mulf %40, %39 : vector<32x64xf32>
    %42 = math.tanh %41 : vector<32x64xf32>
    %cst_21 = arith.constant 1.000000e+00 : f32
    %43 = vector.broadcast %cst_21 : f32 to vector<32x64xf32>
    %44 = arith.addf %43, %42 : vector<32x64xf32>
    %cst_22 = arith.constant 5.000000e-01 : f32
    %45 = vector.broadcast %cst_22 : f32 to vector<32x64xf32>
    %46 = arith.mulf %45, %44 : vector<32x64xf32>
    %47 = arith.mulf %34, %46 : vector<32x64xf32>
    %c0_23 = arith.constant 0 : index
    %c0_24 = arith.constant 0 : index
    %48 = vector.load %arg8[%c0_23, %c0_24] : memref<64x32xf32, #tpu.memory_space<vmem>>, vector<64x32xf32>
    %cst_25 = arith.constant dense<0.000000e+00> : vector<32x32xf32>
    %49 = tpu.matmul %47, %48, %cst_25 {dimension_numbers = #tpu.dot_dimension_numbers<[1], [0], [0], [1], [0, 0, 1, 1], [], []>} : vector<32x64xf32>, vector<64x32xf32>, vector<32x32xf32> -> vector<32x32xf32>
    %50 = arith.addf %29, %49 : vector<32x32xf32>
    %c0_26 = arith.constant 0 : index
    %c0_27 = arith.constant 0 : index
    %51 = vector.load %arg9[%c0_26, %c0_27] : memref<1x32xf32, #tpu.memory_space<vmem>>, vector<1x32xf32>
    %52 = vector.broadcast %51 : vector<1x32xf32> to vector<32x32xf32>
    %53 = arith.addf %50, %52 : vector<32x32xf32>
    %c0_28 = arith.constant 0 : index
    %c0_29 = arith.constant 0 : index
    %54 = vector.load %arg10[%c0_28, %c0_29] : memref<32x32xf32, #tpu.memory_space<vmem>>, vector<32x32xf32>
    %cst_30 = arith.constant dense<0.000000e+00> : vector<32x32xf32>
    %55 = tpu.matmul %53, %54, %cst_30 {dimension_numbers = #tpu.dot_dimension_numbers<[1], [0], [0], [1], [0, 0, 1, 1], [], []>} : vector<32x32xf32>, vector<32x32xf32>, vector<32x32xf32> -> vector<32x32xf32>
    %c0_31 = arith.constant 0 : index
    %c0_32 = arith.constant 0 : index
    %56 = vector.load %arg11[%c0_31, %c0_32] : memref<1x32xf32, #tpu.memory_space<vmem>>, vector<1x32xf32>
    %57 = vector.broadcast %56 : vector<1x32xf32> to vector<32x32xf32>
    %58 = arith.addf %55, %57 : vector<32x32xf32>
    %cst_33 = arith.constant 0.000000e+00 : f32
    %59 = vector.broadcast %cst_33 : f32 to vector<32x32xf32>
    %60 = arith.maximumf %58, %59 : vector<32x32xf32>
    %c0_34 = arith.constant 0 : index
    %c0_35 = arith.constant 0 : index
    %61 = vector.load %arg12[%c0_34, %c0_35] : memref<32x128xf32, #tpu.memory_space<vmem>>, vector<32x128xf32>
    %cst_36 = arith.constant dense<0.000000e+00> : vector<32x128xf32>
    %62 = tpu.matmul %60, %61, %cst_36 {dimension_numbers = #tpu.dot_dimension_numbers<[1], [0], [0], [1], [0, 0, 1, 1], [], []>} : vector<32x32xf32>, vector<32x128xf32>, vector<32x128xf32> -> vector<32x128xf32>
    %c0_37 = arith.constant 0 : index
    %c0_38 = arith.constant 0 : index
    %63 = vector.load %arg13[%c0_37, %c0_38] : memref<1x128xf32, #tpu.memory_space<vmem>>, vector<1x128xf32>
    %64 = vector.broadcast %63 : vector<1x128xf32> to vector<32x128xf32>
    %65 = arith.addf %62, %64 : vector<32x128xf32>
    %c0_39 = arith.constant 0 : index
    %c0_40 = arith.constant 0 : index
    %66 = vector.load %arg14[%c0_39, %c0_40] : memref<32x128xf32, #tpu.memory_space<vmem>>, vector<32x128xf32>
    tpu.vector_store %arg14[%c0_39, %c0_40], %65 {strides = array<i32>} : memref<32x128xf32, #tpu.memory_space<vmem>>, vector<32x128xf32>,
    return
  }
  func.func @transform_0(%arg0: i32) -> (i32, i32) {
    %c0_i32 = arith.constant 0 : i32
    %c0_i32_0 = arith.constant 0 : i32
    return %arg0, %c0_i32 : i32, i32
  }
  func.func @transform_1(%arg0: i32) -> (i32, i32) {
    %c0_i32 = arith.constant 0 : i32
    %c0_i32_0 = arith.constant 0 : i32
    %c0_i32_1 = arith.constant 0 : i32
    return %c0_i32, %c0_i32_0 : i32, i32
  }
  func.func @transform_2(%arg0: i32) -> (i32, i32) {
    %c0_i32 = arith.constant 0 : i32
    %c0_i32_0 = arith.constant 0 : i32
    %c0_i32_1 = arith.constant 0 : i32
    return %c0_i32, %c0_i32_0 : i32, i32
  }
  func.func @transform_3(%arg0: i32) -> (i32, i32) {
    %c0_i32 = arith.constant 0 : i32
    %c0_i32_0 = arith.constant 0 : i32
    %c0_i32_1 = arith.constant 0 : i32
    return %c0_i32, %c0_i32_0 : i32, i32
  }
  func.func @transform_4(%arg0: i32) -> (i32, i32) {
    %c0_i32 = arith.constant 0 : i32
    %c0_i32_0 = arith.constant 0 : i32
    %c0_i32_1 = arith.constant 0 : i32
    return %c0_i32, %c0_i32_0 : i32, i32
  }
  func.func @transform_5(%arg0: i32) -> (i32, i32) {
    %c0_i32 = arith.constant 0 : i32
    %c0_i32_0 = arith.constant 0 : i32
    %c0_i32_1 = arith.constant 0 : i32
    return %c0_i32, %c0_i32_0 : i32, i32
  }
  func.func @transform_6(%arg0: i32) -> (i32, i32) {
    %c0_i32 = arith.constant 0 : i32
    %c0_i32_0 = arith.constant 0 : i32
    %c0_i32_1 = arith.constant 0 : i32
    return %c0_i32, %c0_i32_0 : i32, i32
  }
  func.func @transform_7(%arg0: i32) -> (i32, i32) {
    %c0_i32 = arith.constant 0 : i32
    %c0_i32_0 = arith.constant 0 : i32
    %c0_i32_1 = arith.constant 0 : i32
    return %c0_i32, %c0_i32_0 : i32, i32
  }
  func.func @transform_8(%arg0: i32) -> (i32, i32) {
    %c0_i32 = arith.constant 0 : i32
    %c0_i32_0 = arith.constant 0 : i32
    %c0_i32_1 = arith.constant 0 : i32
    return %c0_i32, %c0_i32_0 : i32, i32
  }
  func.func @transform_9(%arg0: i32) -> (i32, i32) {
    %c0_i32 = arith.constant 0 : i32
    %c0_i32_0 = arith.constant 0 : i32
    %c0_i32_1 = arith.constant 0 : i32
    return %c0_i32, %c0_i32_0 : i32, i32
  }
  func.func @transform_10(%arg0: i32) -> (i32, i32) {
    %c0_i32 = arith.constant 0 : i32
    %c0_i32_0 = arith.constant 0 : i32
    %c0_i32_1 = arith.constant 0 : i32
    return %c0_i32, %c0_i32_0 : i32, i32
  }
  func.func @transform_11(%arg0: i32) -> (i32, i32) {
    %c0_i32 = arith.constant 0 : i32
    %c0_i32_0 = arith.constant 0 : i32
    %c0_i32_1 = arith.constant 0 : i32
    return %c0_i32, %c0_i32_0 : i32, i32
  }
  func.func @transform_12(%arg0: i32) -> (i32, i32) {
    %c0_i32 = arith.constant 0 : i32
    %c0_i32_0 = arith.constant 0 : i32
    %c0_i32_1 = arith.constant 0 : i32
    return %c0_i32, %c0_i32_0 : i32, i32
  }
  func.func @transform_13(%arg0: i32) -> (i32, i32) {
    %c0_i32 = arith.constant 0 : i32
    %c0_i32_0 = arith.constant 0 : i32
    return %arg0, %c0_i32 : i32, i32
  }
}

</mosaic_0001>

<llo_original>
// kernel: tpu_custom_call.1
$region0: #{tpu_custom_call.1}
  #allocation0 [shape = 'u32[]', space=smem, size = 0x4, offset = 0x4, fixed_abs, tag = 'smem constant byte address 0x4 - core index']
  #allocation1 [shape = 'u32[144,128]{1,0:T(1,128)}', space=vmem, size = 0x12000, scoped, tag = 'internal scratch']
  %s0 = inlined_call_operand.vmem [shape: f32[32,64], index: 0, kind: input, shape index: {}]
  %s1 = inlined_call_operand.vmem [shape: f32[64,32], index: 1, kind: input, shape index: {}]
  %s2 = inlined_call_operand.vmem [shape: f32[1,32], index: 2, kind: input, shape index: {}]
  %s3 = inlined_call_operand.vmem [shape: f32[1,32], index: 3, kind: input, shape index: {}]
  %s4 = inlined_call_operand.vmem [shape: f32[1,32], index: 4, kind: input, shape index: {}]
  %s5 = inlined_call_operand.vmem [shape: f32[32,64], index: 5, kind: input, shape index: {}]
  %s6 = inlined_call_operand.vmem [shape: f32[1,64], index: 6, kind: input, shape index: {}]
  %s7 = inlined_call_operand.vmem [shape: f32[64,32], index: 7, kind: input, shape index: {}]
  %s8 = inlined_call_operand.vmem [shape: f32[1,32], index: 8, kind: input, shape index: {}]
  %s9 = inlined_call_operand.vmem [shape: f32[32,32], index: 9, kind: input, shape index: {}]
  %s10 = inlined_call_operand.vmem [shape: f32[1,32], index: 10, kind: input, shape index: {}]
  %s11 = inlined_call_operand.vmem [shape: f32[32,128], index: 11, kind: input, shape index: {}]
  %s12 = inlined_call_operand.vmem [shape: f32[1,128], index: 12, kind: input, shape index: {}]
  %s13 = inlined_call_operand.hbm [shape: f32[32,128], index: 13, kind: output, shape index: {}]
  %s14 = sld [smem:[#allocation0]]
  $region62: #{tpu_custom_call.1} parent=0
    _
  %s16 = ssub.s32 1, %s14
  %s17 = scalar_select 0, %s16, %s14
  $region1: #{tpu_custom_call.1} parent=0
    #allocation2 [shape = 'u8[16384]{0}', space=vmem, size = 0x4000, scoped, tag = 'output window, operand 0, single buffered']
    #allocation3 [shape = 's32[1]{0}', space=sflag, size = 0x4, scoped, tag = 'scoped memory for tpu_custom_call.1']
    %18 = vsyncpa [#allocation3], 0
    // Predicated region
    $region2: #{tpu_custom_call.1} parent=1 // pred_check
      _
    $region3: #{tpu_custom_call.1} parent=1 // pred_check_branch
      %20 = sbr.rel (0) target = $region5
    $region4: #{tpu_custom_call.1} parent=1 // pred_region
      _
    $region5: #{tpu_custom_call.1} parent=1 // pred_fallthru
      _
    // Predicated region
    $region6: #{tpu_custom_call.1} parent=1 // pred_check
      _
    $region7: #{tpu_custom_call.1} parent=1 // pred_check_branch
      %22 = sbr.rel (0) target = $region9
    $region8: #{tpu_custom_call.1} parent=1 // pred_region
      _
    $region9: #{tpu_custom_call.1} parent=1 // pred_fallthru
      _
    // Predicated region
    $region10: #{tpu_custom_call.1} parent=1 // pred_check
      _
    $region11: #{tpu_custom_call.1} parent=1 // pred_check_branch
      %24 = sbr.rel (0) target = $region13
    $region12: #{tpu_custom_call.1} parent=1 // pred_region
      _
    $region13: #{tpu_custom_call.1} parent=1 // pred_fallthru
      _
    // Predicated region
    $region14: #{tpu_custom_call.1} parent=1 // pred_check
      _
    $region15: #{tpu_custom_call.1} parent=1 // pred_check_branch
      %26 = sbr.rel (0) target = $region17
    $region16: #{tpu_custom_call.1} parent=1 // pred_region
      _
    $region17: #{tpu_custom_call.1} parent=1 // pred_fallthru
      _
    // Predicated region
    $region18: #{tpu_custom_call.1} parent=1 // pred_check
      _
    $region19: #{tpu_custom_call.1} parent=1 // pred_check_branch
      %28 = sbr.rel (0) target = $region21
    $region20: #{tpu_custom_call.1} parent=1 // pred_region
      _
    $region21: #{tpu_custom_call.1} parent=1 // pred_fallthru
      _
    // Predicated region
    $region22: #{tpu_custom_call.1} parent=1 // pred_check
      _
    $region23: #{tpu_custom_call.1} parent=1 // pred_check_branch
      %30 = sbr.rel (0) target = $region25
    $region24: #{tpu_custom_call.1} parent=1 // pred_region
      _
    $region25: #{tpu_custom_call.1} parent=1 // pred_fallthru
      _
    // Predicated region
    $region26: #{tpu_custom_call.1} parent=1 // pred_check
      _
    $region27: #{tpu_custom_call.1} parent=1 // pred_check_branch
      %32 = sbr.rel (0) target = $region29
    $region28: #{tpu_custom_call.1} parent=1 // pred_region
      _
    $region29: #{tpu_custom_call.1} parent=1 // pred_fallthru
      _
    // Predicated region
    $region30: #{tpu_custom_call.1} parent=1 // pred_check
      _
    $region31: #{tpu_custom_call.1} parent=1 // pred_check_branch
      %34 = sbr.rel (0) target = $region33
    $region32: #{tpu_custom_call.1} parent=1 // pred_region
      _
    $region33: #{tpu_custom_call.1} parent=1 // pred_fallthru
      _
    // Predicated region
    $region34: #{tpu_custom_call.1} parent=1 // pred_check
      _
    $region35: #{tpu_custom_call.1} parent=1 // pred_check_branch
      %36 = sbr.rel (0) target = $region37
    $region36: #{tpu_custom_call.1} parent=1 // pred_region
      _
    $region37: #{tpu_custom_call.1} parent=1 // pred_fallthru
      _
    // Predicated region
    $region38: #{tpu_custom_call.1} parent=1 // pred_check
      _
    $region39: #{tpu_custom_call.1} parent=1 // pred_check_branch
      %38 = sbr.rel (0) target = $region41
    $region40: #{tpu_custom_call.1} parent=1 // pred_region
      _
    $region41: #{tpu_custom_call.1} parent=1 // pred_fallthru
      _
    // Predicated region
    $region42: #{tpu_custom_call.1} parent=1 // pred_check
      _
    $region43: #{tpu_custom_call.1} parent=1 // pred_check_branch
      %40 = sbr.rel (0) target = $region45
    $region44: #{tpu_custom_call.1} parent=1 // pred_region
      _
    $region45: #{tpu_custom_call.1} parent=1 // pred_fallthru
      _
    // Predicated region
    $region46: #{tpu_custom_call.1} parent=1 // pred_check
      _
    $region47: #{tpu_custom_call.1} parent=1 // pred_check_branch
      %42 = sbr.rel (0) target = $region49
    $region48: #{tpu_custom_call.1} parent=1 // pred_region
      _
    $region49: #{tpu_custom_call.1} parent=1 // pred_fallthru
      _
    // Predicated region
    $region50: #{tpu_custom_call.1} parent=1 // pred_check
      _
    $region51: #{tpu_custom_call.1} parent=1 // pred_check_branch
      %44 = sbr.rel (0) target = $region53
    $region52: #{tpu_custom_call.1} parent=1 // pred_region
      _
    $region53: #{tpu_custom_call.1} parent=1 // pred_fallthru
      _
    %v45 = vld [vmem:[%s0] sm:$0xff]
    %v46 = vld [vmem:[%s0 + $0x8] sm:$0xff]
    %v47 = vld [vmem:[%s0 + $0x10] sm:$0xff]
    %v48 = vld [vmem:[%s0 + $0x18] sm:$0xff]
    %v49 = vld [vmem:[%s1] sm:$0xff]
    %v50 = vld [vmem:[%s1 + $0x8] sm:$0xff]
    %v51 = vld [vmem:[%s1 + $0x10] sm:$0xff]
    %v52 = vld [vmem:[%s1 + $0x18] sm:$0xff]
    %v53 = vld [vmem:[%s1 + $0x20] sm:$0xff]
    %v54 = vld [vmem:[%s1 + $0x28] sm:$0xff]
    %v55 = vld [vmem:[%s1 + $0x30] sm:$0xff]
    %v56 = vld [vmem:[%s1 + $0x38] sm:$0xff]
    %v57 = vld [vmem:[%s2] sm:$0x1]
    %v59 = vlaneseq
    %v60 = vshrl.u32 %v59, 7
    %v61 = vsub.s32 0, %v60
    %v62 = vrot.slane %v57, %v61
    %vm64 = vcmask 523264
    %v66 = vsel %vm64, %v45, 0
    %v69 = vsel %vm64, %v46, 0
    %v72 = vsel %vm64, %v47, 0
    %v75 = vsel %vm64, %v48, 0
    %77 = vmatprep.subr.mxu0 0.0
    %78 = vmatpush1.msra.mxu0 %v49
    %79 = vmatprep.subr.mxu0 0.0
    %80 = vmatpush1.msra.mxu0 %v50
    %81 = vmatprep.subr.mxu0 0.0
    %82 = vmatpush1.msra.mxu0 %v51
    %83 = vmatprep.subr.mxu0 0.0
    %84 = vmatpush1.msra.mxu0 %v52
    %85 = vmatprep.subr.mxu0 0.0
    %86 = vmatpush1.msra.mxu0 %v53
    %87 = vmatprep.subr.mxu0 0.0
    %88 = vmatpush1.msra.mxu0 %v54
    %89 = vmatprep.subr.mxu0 0.0
    %90 = vmatpush1.msra.mxu0 %v55
    %91 = vmatprep.subr.mxu0 0.0
    %92 = vmatpush1.msra.mxu0 %v56
    %93 = vmatprep.subr.mxu0 0.0
    %94 = vmatpush1.msra.mxu0 0.0
    %95 = vmatprep.subr.mxu0 0.0
    %96 = vmatpush1.msra.mxu0 0.0
    %97 = vmatprep.subr.mxu0 0.0
    %98 = vmatpush1.msra.mxu0 0.0
    %99 = vmatprep.subr.mxu0 0.0
    %100 = vmatpush1.msra.mxu0 0.0
    %101 = vmatprep.subr.mxu0 0.0
    %102 = vmatpush1.msra.mxu0 0.0
    %103 = vmatprep.subr.mxu0 0.0
    %104 = vmatpush1.msra.mxu0 0.0
    %105 = vmatprep.subr.mxu0 0.0
    %106 = vmatpush1.msra.mxu0 0.0
    %107 = vmatprep.subr.mxu0 0.0
    %108 = vmatpush1.msra.mxu0 0.0
    %109 = vmatprep.subr.mxu0 0.0
    %110 = vmatpush1.msra.mxu0 0.0
    %111 = vmatprep.subr.mxu0 0.0
    %112 = vmatpush1.msra.mxu0 0.0
    %113 = vmatprep.subr.mxu0 0.0
    %114 = vmatpush1.msra.mxu0 0.0
    %115 = vmatprep.subr.mxu0 0.0
    %116 = vmatpush1.msra.mxu0 0.0
    %117 = vmatprep.subr.mxu0 0.0
    %118 = vmatpush1.msra.mxu0 0.0
    %119 = vmatprep.subr.mxu0 0.0
    %120 = vmatpush1.msra.mxu0 0.0
    %121 = vmatprep.subr.mxu0 0.0
    %122 = vmatpush1.msra.mxu0 0.0
    %123 = vmatprep.subr.mxu0 0.0
    %124 = vmatpush1.msra.mxu0 0.0
    %125 = vmatprep.subr.mxu0 0.0
    %126 = vmatpush1.msra.mxu0 0.0
    %127 = vmatprep.subr.mxu0 0.0
    %128 = vmatpush1.msra.mxu0 0.0
    %129 = vmatprep.subr.mxu0 0.0
    %130 = vmatpush1.msra.mxu0 0.0
    %131 = vmatprep.subr.mxu0 0.0
    %132 = vmatpush1.msra.mxu0 0.0
    %133 = vmatprep.subr.mxu0 0.0
    %134 = vmatpush1.msra.mxu0 0.0
    %135 = vmatprep.subr.mxu0 0.0
    %136 = vmatpush1.msra.mxu0 0.0
    %137 = vmatprep.subr.mxu0 0.0
    %138 = vmatpush1.msra.mxu0 0.0
    %139 = vmatprep.subr.mxu0 0.0
    %140 = vmatpush1.msra.mxu0 0.0
    %141 = vmatprep.mubr.f32.mxu0 0.0
    %142 = vmatmul.mubr.f32.gmra.mrb[0].mxu0 %v66
    %v143 = vpop.f32.mrb[0].mxu0
    %v144 = vadd.f32 %v62, %v143
    %v145 = vpop.f32.mrb[0].mxu0
    %146 = vmatprep.mubr.f32.mxu0 0.0
    %147 = vmatmul.mubr.f32.gmra.mrb[0].mxu0 %v69
    %v148 = vpop.f32.mrb[0].mxu0
    %v149 = vadd.f32 %v62, %v148
    %v150 = vpop.f32.mrb[0].mxu0
    %151 = vmatprep.mubr.f32.mxu0 0.0
    %152 = vmatmul.mubr.f32.gmra.mrb[0].mxu0 %v72
    %v153 = vpop.f32.mrb[0].mxu0
    %v154 = vadd.f32 %v62, %v153
    %v155 = vpop.f32.mrb[0].mxu0
    %156 = vmatprep.mubr.f32.mxu0 0.0
    %157 = vmatmul.mubr.f32.gmra.mrb[0].mxu0 %v75
    %v158 = vpop.f32.mrb[0].mxu0
    %v159 = vadd.f32 %v62, %v158
    %v160 = vpop.f32.mrb[0].mxu0
    %161 = vdwg.mxu0
    %vm162 = vcmask 261120
    %v163 = vsel %vm162, %v144, 0.0
    %164 = vadd.xlane.f32.xlu0 %v163
    %v165 = vpop.xlane.xlu0 %164
    %v166 = vsel %vm162, %v149, 0.0
    %167 = vadd.xlane.f32.xlu0 %v166
    %v168 = vpop.xlane.xlu0 %167
    %v169 = vsel %vm162, %v154, 0.0
    %170 = vadd.xlane.f32.xlu0 %v169
    %v171 = vpop.xlane.xlu0 %170
    %v172 = vsel %vm162, %v159, 0.0
    %173 = vadd.xlane.f32.xlu0 %v172
    %v174 = vpop.xlane.xlu0 %173
    %v175 = vrcp.pop 32.0
    %v176 = vmul.f32 %v165, %v175
    %v177 = vmul.f32 %v168, %v175
    %v178 = vmul.f32 %v171, %v175
    %v179 = vmul.f32 %v174, %v175
    %v180 = vsub.f32 %v144, %v176
    %v181 = vsub.f32 %v149, %v177
    %v182 = vsub.f32 %v154, %v178
    %v183 = vsub.f32 %v159, %v179
    %v184 = vmul.f32 %v180, %v180
    %v185 = vmul.f32 %v181, %v181
    %v186 = vmul.f32 %v182, %v182
    %v187 = vmul.f32 %v183, %v183
    %v188 = vsel %vm162, %v184, 0.0
    %189 = vadd.xlane.f32.xlu0 %v188
    %v190 = vpop.xlane.xlu0 %189
    %v191 = vsel %vm162, %v185, 0.0
    %192 = vadd.xlane.f32.xlu0 %v191
    %v193 = vpop.xlane.xlu0 %192
    %v194 = vsel %vm162, %v186, 0.0
    %195 = vadd.xlane.f32.xlu0 %v194
    %v196 = vpop.xlane.xlu0 %195
    %v197 = vsel %vm162, %v187, 0.0
    %198 = vadd.xlane.f32.xlu0 %v197
    %v199 = vpop.xlane.xlu0 %198
    %v200 = vmul.f32 %v190, %v175
    %v201 = vmul.f32 %v193, %v175
    %v202 = vmul.f32 %v196, %v175
    %v203 = vmul.f32 %v199, %v175
    %v204 = vadd.f32 %v200, 1e-06
    %v205 = vadd.f32 %v201, 1e-06
    %v206 = vadd.f32 %v202, 1e-06
    %v207 = vadd.f32 %v203, 1e-06
    %v208 = vrsqrt.pop %v204
    %v209 = vrsqrt.pop %v205
    %v210 = vrsqrt.pop %v206
    %v211 = vrsqrt.pop %v207
    %v212 = vmul.f32 %v180, %v208
    %v213 = vmul.f32 %v181, %v209
    %v214 = vmul.f32 %v182, %v210
    %v215 = vmul.f32 %v183, %v211
    %v216 = vld [vmem:[%s3] sm:$0x1]
    %v218 = vlaneseq
    %v219 = vshrl.u32 %v218, 7
    %v220 = vsub.s32 0, %v219
    %v221 = vrot.slane %v216, %v220
    %v223 = vmul.f32 %v212, %v221
    %v224 = vmul.f32 %v213, %v221
    %v225 = vmul.f32 %v214, %v221
    %v226 = vmul.f32 %v215, %v221
    %v227 = vld [vmem:[%s4] sm:$0x1]
    %v229 = vlaneseq
    %v230 = vshrl.u32 %v229, 7
    %v231 = vsub.s32 0, %v230
    %v232 = vrot.slane %v227, %v231
    %v234 = vadd.f32 %v223, %v232
    %v235 = vadd.f32 %v224, %v232
    %v236 = vadd.f32 %v225, %v232
    %v237 = vadd.f32 %v226, %v232
    %v238 = vld [vmem:[%s5] sm:$0xff]
    %v239 = vld [vmem:[%s5 + $0x8] sm:$0xff]
    %v240 = vld [vmem:[%s5 + $0x10] sm:$0xff]
    %v241 = vld [vmem:[%s5 + $0x18] sm:$0xff]
    %v242 = vld [vmem:[%s6] sm:$0x1]
    %v244 = vlaneseq
    %v245 = vshrl.u32 %v244, 7
    %v246 = vsub.s32 0, %v245
    %v247 = vrot.slane %v242, %v246
    %v250 = vsel %vm162, %v234, 0
    %v253 = vsel %vm162, %v235, 0
    %v256 = vsel %vm162, %v236, 0
    %v259 = vsel %vm162, %v237, 0
    %261 = vmatprep.subr.mxu0 0.0
    %262 = vmatpush1.msra.mxu0 %v238
    %263 = vmatprep.subr.mxu0 0.0
    %264 = vmatpush1.msra.mxu0 %v239
    %265 = vmatprep.subr.mxu0 0.0
    %266 = vmatpush1.msra.mxu0 %v240
    %267 = vmatprep.subr.mxu0 0.0
    %268 = vmatpush1.msra.mxu0 %v241
    %269 = vmatprep.subr.mxu0 0.0
    %270 = vmatpush1.msra.mxu0 0.0
    %271 = vmatprep.subr.mxu0 0.0
    %272 = vmatpush1.msra.mxu0 0.0
    %273 = vmatprep.subr.mxu0 0.0
    %274 = vmatpush1.msra.mxu0 0.0
    %275 = vmatprep.subr.mxu0 0.0
    %276 = vmatpush1.msra.mxu0 0.0
    %277 = vmatprep.subr.mxu0 0.0
    %278 = vmatpush1.msra.mxu0 0.0
    %279 = vmatprep.subr.mxu0 0.0
    %280 = vmatpush1.msra.mxu0 0.0
    %281 = vmatprep.subr.mxu0 0.0
    %282 = vmatpush1.msra.mxu0 0.0
    %283 = vmatprep.subr.mxu0 0.0
    %284 = vmatpush1.msra.mxu0 0.0
    %285 = vmatprep.subr.mxu0 0.0
    %286 = vmatpush1.msra.mxu0 0.0
    %287 = vmatprep.subr.mxu0 0.0
    %288 = vmatpush1.msra.mxu0 0.0
    %289 = vmatprep.subr.mxu0 0.0
    %290 = vmatpush1.msra.mxu0 0.0
    %291 = vmatprep.subr.mxu0 0.0
    %292 = vmatpush1.msra.mxu0 0.0
    %293 = vmatprep.subr.mxu0 0.0
    %294 = vmatpush1.msra.mxu0 0.0
    %295 = vmatprep.subr.mxu0 0.0
    %296 = vmatpush1.msra.mxu0 0.0
    %297 = vmatprep.subr.mxu0 0.0
    %298 = vmatpush1.msra.mxu0 0.0
    %299 = vmatprep.subr.mxu0 0.0
    %300 = vmatpush1.msra.mxu0 0.0
    %301 = vmatprep.subr.mxu0 0.0
    %302 = vmatpush1.msra.mxu0 0.0
    %303 = vmatprep.subr.mxu0 0.0
    %304 = vmatpush1.msra.mxu0 0.0
    %305 = vmatprep.subr.mxu0 0.0
    %306 = vmatpush1.msra.mxu0 0.0
    %307 = vmatprep.subr.mxu0 0.0
    %308 = vmatpush1.msra.mxu0 0.0
    %309 = vmatprep.subr.mxu0 0.0
    %310 = vmatpush1.msra.mxu0 0.0
    %311 = vmatprep.subr.mxu0 0.0
    %312 = vmatpush1.msra.mxu0 0.0
    %313 = vmatprep.subr.mxu0 0.0
    %314 = vmatpush1.msra.mxu0 0.0
    %315 = vmatprep.subr.mxu0 0.0
    %316 = vmatpush1.msra.mxu0 0.0
    %317 = vmatprep.subr.mxu0 0.0
    %318 = vmatpush1.msra.mxu0 0.0
    %319 = vmatprep.subr.mxu0 0.0
    %320 = vmatpush1.msra.mxu0 0.0
    %321 = vmatprep.subr.mxu0 0.0
    %322 = vmatpush1.msra.mxu0 0.0
    %323 = vmatprep.subr.mxu0 0.0
    %324 = vmatpush1.msra.mxu0 0.0
    %325 = vmatprep.mubr.f32.mxu0 0.0
    %326 = vmatmul.mubr.f32.gmra.mrb[0].mxu0 %v250
    %v327 = vpop.f32.mrb[0].mxu0
    %v328 = vadd.f32 %v247, %v327
    %v329 = vpop.f32.mrb[0].mxu0
    %330 = vmatprep.mubr.f32.mxu0 0.0
    %331 = vmatmul.mubr.f32.gmra.mrb[0].mxu0 %v253
    %v332 = vpop.f32.mrb[0].mxu0
    %v333 = vadd.f32 %v247, %v332
    %v334 = vpop.f32.mrb[0].mxu0
    %335 = vmatprep.mubr.f32.mxu0 0.0
    %336 = vmatmul.mubr.f32.gmra.mrb[0].mxu0 %v256
    %v337 = vpop.f32.mrb[0].mxu0
    %v338 = vadd.f32 %v247, %v337
    %v339 = vpop.f32.mrb[0].mxu0
    %340 = vmatprep.mubr.f32.mxu0 0.0
    %341 = vmatmul.mubr.f32.gmra.mrb[0].mxu0 %v259
    %v342 = vpop.f32.mrb[0].mxu0
    %v343 = vadd.f32 %v247, %v342
    %v344 = vpop.f32.mrb[0].mxu0
    %345 = vdwg.mxu0
    %v346 = vmul.f32 %v328, %v328
    %v347 = vmul.f32 %v333, %v333
    %v348 = vmul.f32 %v338, %v338
    %v349 = vmul.f32 %v343, %v343
    %v350 = vmul.f32 %v328, %v346
    %v351 = vmul.f32 %v333, %v347
    %v352 = vmul.f32 %v338, %v348
    %v353 = vmul.f32 %v343, %v349
    %v354 = vmul.f32 %v350, 0.044715
    %v355 = vmul.f32 %v351, 0.044715
    %v356 = vmul.f32 %v352, 0.044715
    %v357 = vmul.f32 %v353, 0.044715
    %v358 = vadd.f32 %v328, %v354
    %v359 = vadd.f32 %v333, %v355
    %v360 = vadd.f32 %v338, %v356
    %v361 = vadd.f32 %v343, %v357
    %v362 = vmul.f32 %v358, 0.7978846
    %v363 = vmul.f32 %v359, 0.7978846
    %v364 = vmul.f32 %v360, 0.7978846
    %v365 = vmul.f32 %v361, 0.7978846
    %v366 = vtanh.pop %v362
    %v367 = vtanh.pop %v363
    %v368 = vtanh.pop %v364
    %v369 = vtanh.pop %v365
    %v370 = vadd.f32 %v366, 1.0
    %v371 = vadd.f32 %v367, 1.0
    %v372 = vadd.f32 %v368, 1.0
    %v373 = vadd.f32 %v369, 1.0
    %v374 = vmul.f32 %v370, 0.5
    %v375 = vmul.f32 %v371, 0.5
    %v376 = vmul.f32 %v372, 0.5
    %v377 = vmul.f32 %v373, 0.5
    %v378 = vmul.f32 %v328, %v374
    %v379 = vmul.f32 %v333, %v375
    %v380 = vmul.f32 %v338, %v376
    %v381 = vmul.f32 %v343, %v377
    %v382 = vld [vmem:[%s7] sm:$0xff]
    %v383 = vld [vmem:[%s7 + $0x8] sm:$0xff]
    %v384 = vld [vmem:[%s7 + $0x10] sm:$0xff]
    %v385 = vld [vmem:[%s7 + $0x18] sm:$0xff]
    %v386 = vld [vmem:[%s7 + $0x20] sm:$0xff]
    %v387 = vld [vmem:[%s7 + $0x28] sm:$0xff]
    %v388 = vld [vmem:[%s7 + $0x30] sm:$0xff]
    %v389 = vld [vmem:[%s7 + $0x38] sm:$0xff]
    %v391 = vsel %vm64, %v378, 0
    %v394 = vsel %vm64, %v379, 0
    %v397 = vsel %vm64, %v380, 0
    %v400 = vsel %vm64, %v381, 0
    %402 = vmatprep.subr.mxu0 0.0
    %403 = vmatpush1.msra.mxu0 %v382
    %404 = vmatprep.subr.mxu0 0.0
    %405 = vmatpush1.msra.mxu0 %v383
    %406 = vmatprep.subr.mxu0 0.0
    %407 = vmatpush1.msra.mxu0 %v384
    %408 = vmatprep.subr.mxu0 0.0
    %409 = vmatpush1.msra.mxu0 %v385
    %410 = vmatprep.subr.mxu0 0.0
    %411 = vmatpush1.msra.mxu0 %v386
    %412 = vmatprep.subr.mxu0 0.0
    %413 = vmatpush1.msra.mxu0 %v387
    %414 = vmatprep.subr.mxu0 0.0
    %415 = vmatpush1.msra.mxu0 %v388
    %416 = vmatprep.subr.mxu0 0.0
    %417 = vmatpush1.msra.mxu0 %v389
    %418 = vmatprep.subr.mxu0 0.0
    %419 = vmatpush1.msra.mxu0 0.0
    %420 = vmatprep.subr.mxu0 0.0
    %421 = vmatpush1.msra.mxu0 0.0
    %422 = vmatprep.subr.mxu0 0.0
    %423 = vmatpush1.msra.mxu0 0.0
    %424 = vmatprep.subr.mxu0 0.0
    %425 = vmatpush1.msra.mxu0 0.0
    %426 = vmatprep.subr.mxu0 0.0
    %427 = vmatpush1.msra.mxu0 0.0
    %428 = vmatprep.subr.mxu0 0.0
    %429 = vmatpush1.msra.mxu0 0.0
    %430 = vmatprep.subr.mxu0 0.0
    %431 = vmatpush1.msra.mxu0 0.0
    %432 = vmatprep.subr.mxu0 0.0
    %433 = vmatpush1.msra.mxu0 0.0
    %434 = vmatprep.subr.mxu0 0.0
    %435 = vmatpush1.msra.mxu0 0.0
    %436 = vmatprep.subr.mxu0 0.0
    %437 = vmatpush1.msra.mxu0 0.0
    %438 = vmatprep.subr.mxu0 0.0
    %439 = vmatpush1.msra.mxu0 0.0
    %440 = vmatprep.subr.mxu0 0.0
    %441 = vmatpush1.msra.mxu0 0.0
    %442 = vmatprep.subr.mxu0 0.0
    %443 = vmatpush1.msra.mxu0 0.0
    %444 = vmatprep.subr.mxu0 0.0
    %445 = vmatpush1.msra.mxu0 0.0
    %446 = vmatprep.subr.mxu0 0.0
    %447 = vmatpush1.msra.mxu0 0.0
    %448 = vmatprep.subr.mxu0 0.0
    %449 = vmatpush1.msra.mxu0 0.0
    %450 = vmatprep.subr.mxu0 0.0
    %451 = vmatpush1.msra.mxu0 0.0
    %452 = vmatprep.subr.mxu0 0.0
    %453 = vmatpush1.msra.mxu0 0.0
    %454 = vmatprep.subr.mxu0 0.0
    %455 = vmatpush1.msra.mxu0 0.0
    %456 = vmatprep.subr.mxu0 0.0
    %457 = vmatpush1.msra.mxu0 0.0
    %458 = vmatprep.subr.mxu0 0.0
    %459 = vmatpush1.msra.mxu0 0.0
    %460 = vmatprep.subr.mxu0 0.0
    %461 = vmatpush1.msra.mxu0 0.0
    %462 = vmatprep.subr.mxu0 0.0
    %463 = vmatpush1.msra.mxu0 0.0
    %464 = vmatprep.subr.mxu0 0.0
    %465 = vmatpush1.msra.mxu0 0.0
    %466 = vmatprep.mubr.f32.mxu0 0.0
    %467 = vmatmul.mubr.f32.gmra.mrb[0].mxu0 %v391
    %v468 = vpop.f32.mrb[0].mxu0
    %v469 = vadd.f32 0.0, %v468
    %v470 = vpop.f32.mrb[0].mxu0
    %471 = vmatprep.mubr.f32.mxu0 0.0
    %472 = vmatmul.mubr.f32.gmra.mrb[0].mxu0 %v394
    %v473 = vpop.f32.mrb[0].mxu0
    %v474 = vadd.f32 0.0, %v473
    %v475 = vpop.f32.mrb[0].mxu0
    %476 = vmatprep.mubr.f32.mxu0 0.0
    %477 = vmatmul.mubr.f32.gmra.mrb[0].mxu0 %v397
    %v478 = vpop.f32.mrb[0].mxu0
    %v479 = vadd.f32 0.0, %v478
    %v480 = vpop.f32.mrb[0].mxu0
    %481 = vmatprep.mubr.f32.mxu0 0.0
    %482 = vmatmul.mubr.f32.gmra.mrb[0].mxu0 %v400
    %v483 = vpop.f32.mrb[0].mxu0
    %v484 = vadd.f32 0.0, %v483
    %v485 = vpop.f32.mrb[0].mxu0
    %486 = vdwg.mxu0
    %v487 = vadd.f32 %v234, %v469
    %v488 = vadd.f32 %v235, %v474
    %v489 = vadd.f32 %v236, %v479
    %v490 = vadd.f32 %v237, %v484
    %v491 = vld [vmem:[%s8] sm:$0x1]
    %v493 = vlaneseq
    %v494 = vshrl.u32 %v493, 7
    %v495 = vsub.s32 0, %v494
    %v496 = vrot.slane %v491, %v495
    %v498 = vadd.f32 %v487, %v496
    %v499 = vadd.f32 %v488, %v496
    %v500 = vadd.f32 %v489, %v496
    %v501 = vadd.f32 %v490, %v496
    %v502 = vld [vmem:[%s9] sm:$0xff]
    %v503 = vld [vmem:[%s9 + $0x8] sm:$0xff]
    %v504 = vld [vmem:[%s9 + $0x10] sm:$0xff]
    %v505 = vld [vmem:[%s9 + $0x18] sm:$0xff]
    %v506 = vld [vmem:[%s10] sm:$0x1]
    %v508 = vlaneseq
    %v509 = vshrl.u32 %v508, 7
    %v510 = vsub.s32 0, %v509
    %v511 = vrot.slane %v506, %v510
    %v514 = vsel %vm162, %v498, 0
    %v517 = vsel %vm162, %v499, 0
    %v520 = vsel %vm162, %v500, 0
    %v523 = vsel %vm162, %v501, 0
    %525 = vmatprep.subr.mxu0 0.0
    %526 = vmatpush1.msra.mxu0 %v502
    %527 = vmatprep.subr.mxu0 0.0
    %528 = vmatpush1.msra.mxu0 %v503
    %529 = vmatprep.subr.mxu0 0.0
    %530 = vmatpush1.msra.mxu0 %v504
    %531 = vmatprep.subr.mxu0 0.0
    %532 = vmatpush1.msra.mxu0 %v505
    %533 = vmatprep.subr.mxu0 0.0
    %534 = vmatpush1.msra.mxu0 0.0
    %535 = vmatprep.subr.mxu0 0.0
    %536 = vmatpush1.msra.mxu0 0.0
    %537 = vmatprep.subr.mxu0 0.0
    %538 = vmatpush1.msra.mxu0 0.0
    %539 = vmatprep.subr.mxu0 0.0
    %540 = vmatpush1.msra.mxu0 0.0
    %541 = vmatprep.subr.mxu0 0.0
    %542 = vmatpush1.msra.mxu0 0.0
    %543 = vmatprep.subr.mxu0 0.0
    %544 = vmatpush1.msra.mxu0 0.0
    %545 = vmatprep.subr.mxu0 0.0
    %546 = vmatpush1.msra.mxu0 0.0
    %547 = vmatprep.subr.mxu0 0.0
    %548 = vmatpush1.msra.mxu0 0.0
    %549 = vmatprep.subr.mxu0 0.0
    %550 = vmatpush1.msra.mxu0 0.0
    %551 = vmatprep.subr.mxu0 0.0
    %552 = vmatpush1.msra.mxu0 0.0
    %553 = vmatprep.subr.mxu0 0.0
    %554 = vmatpush1.msra.mxu0 0.0
    %555 = vmatprep.subr.mxu0 0.0
    %556 = vmatpush1.msra.mxu0 0.0
    %557 = vmatprep.subr.mxu0 0.0
    %558 = vmatpush1.msra.mxu0 0.0
    %559 = vmatprep.subr.mxu0 0.0
    %560 = vmatpush1.msra.mxu0 0.0
    %561 = vmatprep.subr.mxu0 0.0
    %562 = vmatpush1.msra.mxu0 0.0
    %563 = vmatprep.subr.mxu0 0.0
    %564 = vmatpush1.msra.mxu0 0.0
    %565 = vmatprep.subr.mxu0 0.0
    %566 = vmatpush1.msra.mxu0 0.0
    %567 = vmatprep.subr.mxu0 0.0
    %568 = vmatpush1.msra.mxu0 0.0
    %569 = vmatprep.subr.mxu0 0.0
    %570 = vmatpush1.msra.mxu0 0.0
    %571 = vmatprep.subr.mxu0 0.0
    %572 = vmatpush1.msra.mxu0 0.0
    %573 = vmatprep.subr.mxu0 0.0
    %574 = vmatpush1.msra.mxu0 0.0
    %575 = vmatprep.subr.mxu0 0.0
    %576 = vmatpush1.msra.mxu0 0.0
    %577 = vmatprep.subr.mxu0 0.0
    %578 = vmatpush1.msra.mxu0 0.0
    %579 = vmatprep.subr.mxu0 0.0
    %580 = vmatpush1.msra.mxu0 0.0
    %581 = vmatprep.subr.mxu0 0.0
    %582 = vmatpush1.msra.mxu0 0.0
    %583 = vmatprep.subr.mxu0 0.0
    %584 = vmatpush1.msra.mxu0 0.0
    %585 = vmatprep.subr.mxu0 0.0
    %586 = vmatpush1.msra.mxu0 0.0
    %587 = vmatprep.subr.mxu0 0.0
    %588 = vmatpush1.msra.mxu0 0.0
    %589 = vmatprep.mubr.f32.mxu0 0.0
    %590 = vmatmul.mubr.f32.gmra.mrb[0].mxu0 %v514
    %v591 = vpop.f32.mrb[0].mxu0
    %v592 = vadd.f32 %v511, %v591
    %v593 = vpop.f32.mrb[0].mxu0
    %594 = vmatprep.mubr.f32.mxu0 0.0
    %595 = vmatmul.mubr.f32.gmra.mrb[0].mxu0 %v517
    %v596 = vpop.f32.mrb[0].mxu0
    %v597 = vadd.f32 %v511, %v596
    %v598 = vpop.f32.mrb[0].mxu0
    %599 = vmatprep.mubr.f32.mxu0 0.0
    %600 = vmatmul.mubr.f32.gmra.mrb[0].mxu0 %v520
    %v601 = vpop.f32.mrb[0].mxu0
    %v602 = vadd.f32 %v511, %v601
    %v603 = vpop.f32.mrb[0].mxu0
    %604 = vmatprep.mubr.f32.mxu0 0.0
    %605 = vmatmul.mubr.f32.gmra.mrb[0].mxu0 %v523
    %v606 = vpop.f32.mrb[0].mxu0
    %v607 = vadd.f32 %v511, %v606
    %v608 = vpop.f32.mrb[0].mxu0
    %609 = vdwg.mxu0
    %v610 = vmax.f32 %v592, 0.0
    %v611 = vmax.f32 %v597, 0.0
    %v612 = vmax.f32 %v602, 0.0
    %v613 = vmax.f32 %v607, 0.0
    %v614 = vld [vmem:[%s11] sm:$0xff]
    %v615 = vld [vmem:[%s11 + $0x8] sm:$0xff]
    %v616 = vld [vmem:[%s11 + $0x10] sm:$0xff]
    %v617 = vld [vmem:[%s11 + $0x18] sm:$0xff]
    %v618 = vld [vmem:[%s12] sm:$0x1]
    %v620 = vlaneseq
    %v621 = vshrl.u32 %v620, 7
    %v622 = vsub.s32 0, %v621
    %v623 = vrot.slane %v618, %v622
    %v626 = vsel %vm162, %v610, 0
    %v629 = vsel %vm162, %v611, 0
    %v632 = vsel %vm162, %v612, 0
    %v635 = vsel %vm162, %v613, 0
    %637 = vmatprep.subr.mxu0 0.0
    %638 = vmatpush1.msra.mxu0 %v614
    %639 = vmatprep.subr.mxu0 0.0
    %640 = vmatpush1.msra.mxu0 %v615
    %641 = vmatprep.subr.mxu0 0.0
    %642 = vmatpush1.msra.mxu0 %v616
    %643 = vmatprep.subr.mxu0 0.0
    %644 = vmatpush1.msra.mxu0 %v617
    %645 = vmatprep.subr.mxu0 0.0
    %646 = vmatpush1.msra.mxu0 0.0
    %647 = vmatprep.subr.mxu0 0.0
    %648 = vmatpush1.msra.mxu0 0.0
    %649 = vmatprep.subr.mxu0 0.0
    %650 = vmatpush1.msra.mxu0 0.0
    %651 = vmatprep.subr.mxu0 0.0
    %652 = vmatpush1.msra.mxu0 0.0
    %653 = vmatprep.subr.mxu0 0.0
    %654 = vmatpush1.msra.mxu0 0.0
    %655 = vmatprep.subr.mxu0 0.0
    %656 = vmatpush1.msra.mxu0 0.0
    %657 = vmatprep.subr.mxu0 0.0
    %658 = vmatpush1.msra.mxu0 0.0
    %659 = vmatprep.subr.mxu0 0.0
    %660 = vmatpush1.msra.mxu0 0.0
    %661 = vmatprep.subr.mxu0 0.0
    %662 = vmatpush1.msra.mxu0 0.0
    %663 = vmatprep.subr.mxu0 0.0
    %664 = vmatpush1.msra.mxu0 0.0
    %665 = vmatprep.subr.mxu0 0.0
    %666 = vmatpush1.msra.mxu0 0.0
    %667 = vmatprep.subr.mxu0 0.0
    %668 = vmatpush1.msra.mxu0 0.0
    %669 = vmatprep.subr.mxu0 0.0
    %670 = vmatpush1.msra.mxu0 0.0
    %671 = vmatprep.subr.mxu0 0.0
    %672 = vmatpush1.msra.mxu0 0.0
    %673 = vmatprep.subr.mxu0 0.0
    %674 = vmatpush1.msra.mxu0 0.0
    %675 = vmatprep.subr.mxu0 0.0
    %676 = vmatpush1.msra.mxu0 0.0
    %677 = vmatprep.subr.mxu0 0.0
    %678 = vmatpush1.msra.mxu0 0.0
    %679 = vmatprep.subr.mxu0 0.0
    %680 = vmatpush1.msra.mxu0 0.0
    %681 = vmatprep.subr.mxu0 0.0
    %682 = vmatpush1.msra.mxu0 0.0
    %683 = vmatprep.subr.mxu0 0.0
    %684 = vmatpush1.msra.mxu0 0.0
    %685 = vmatprep.subr.mxu0 0.0
    %686 = vmatpush1.msra.mxu0 0.0
    %687 = vmatprep.subr.mxu0 0.0
    %688 = vmatpush1.msra.mxu0 0.0
    %689 = vmatprep.subr.mxu0 0.0
    %690 = vmatpush1.msra.mxu0 0.0
    %691 = vmatprep.subr.mxu0 0.0
    %692 = vmatpush1.msra.mxu0 0.0
    %693 = vmatprep.subr.mxu0 0.0
    %694 = vmatpush1.msra.mxu0 0.0
    %695 = vmatprep.subr.mxu0 0.0
    %696 = vmatpush1.msra.mxu0 0.0
    %697 = vmatprep.subr.mxu0 0.0
    %698 = vmatpush1.msra.mxu0 0.0
    %699 = vmatprep.subr.mxu0 0.0
    %700 = vmatpush1.msra.mxu0 0.0
    %701 = vmatprep.mubr.f32.mxu0 0.0
    %702 = vmatmul.mubr.f32.gmra.mrb[0].mxu0 %v626
    %v703 = vpop.f32.mrb[0].mxu0
    %v704 = vadd.f32 %v623, %v703
    %v705 = vpop.f32.mrb[0].mxu0
    %706 = vmatprep.mubr.f32.mxu0 0.0
    %707 = vmatmul.mubr.f32.gmra.mrb[0].mxu0 %v629
    %v708 = vpop.f32.mrb[0].mxu0
    %v709 = vadd.f32 %v623, %v708
    %v710 = vpop.f32.mrb[0].mxu0
    %711 = vmatprep.mubr.f32.mxu0 0.0
    %712 = vmatmul.mubr.f32.gmra.mrb[0].mxu0 %v632
    %v713 = vpop.f32.mrb[0].mxu0
    %v714 = vadd.f32 %v623, %v713
    %v715 = vpop.f32.mrb[0].mxu0
    %716 = vmatprep.mubr.f32.mxu0 0.0
    %717 = vmatmul.mubr.f32.gmra.mrb[0].mxu0 %v635
    %v718 = vpop.f32.mrb[0].mxu0
    %v719 = vadd.f32 %v623, %v718
    %v720 = vpop.f32.mrb[0].mxu0
    %721 = vdwg.mxu0
    %722 = vst [vmem:[#allocation2] sm:$0xff] %v704
    %723 = vst [vmem:[#allocation2 + $0x8] sm:$0xff] %v709
    %724 = vst [vmem:[#allocation2 + $0x10] sm:$0xff] %v714
    %725 = vst [vmem:[#allocation2 + $0x18] sm:$0xff] %v719
    // Predicated region
    $region54: #{tpu_custom_call.1} parent=1 // pred_check
      _
    $region55: #{tpu_custom_call.1} parent=1 // pred_check_branch
      %727 = sbr.rel (0) target = $region57
    $region56: #{tpu_custom_call.1} parent=1 // pred_region
      %s729 = ssub.s32 512, 512
      %730 = vsyncadd [#allocation3], %s729
      %s731 = sshll.u32 [#allocation2], 4
      %s732 = int_to_ptr.vmem [resolvable:$true] %s731
      %737 = dma.vmem_to_hbm [thread:$0]  %s732, 512, %s13, [#allocation3], 128, 128, 8
    $region57: #{tpu_custom_call.1} parent=1 // pred_fallthru
      _
    // Predicated region
    $region58: #{tpu_custom_call.1} parent=1 // pred_check
      _
    $region59: #{tpu_custom_call.1} parent=1 // pred_check_branch
      %739 = sbr.rel (0) target = $region61
    $region60: #{tpu_custom_call.1} parent=1 // pred_region
      %740 = dma.done [#allocation3], 512
    $region61: #{tpu_custom_call.1} parent=1 // pred_fallthru
      _
    %741 = vsyncpa [#allocation3], 1

</llo_original>
